<compile_context>
chip_gen: v7x
topology: tpu7x:2x2x1
jax: 0.10.0
libtpu: 0.0.40
codegen_flags: <defaults>
</compile_context>

<pallas_src>
import functools
import math
import random

import jax
import jax.numpy as jnp
import numpy as np
from jax.experimental import pallas as pl
from jax.experimental.pallas import tpu as pltpu

_GREY = 122
_LANES = 128
_MAX_BLOCK_BYTES = 2 * 1024 * 1024   # per-block cap; ~4x (in+out, double-buffered)
                                     # stays well under v5e's 16 MiB scoped VMEM


def _rows_per_tile(channels, rows, itemsize):
    """Rows (of 128 lanes) per block: largest multiple of 8 keeping a
    (C, rows, 128) block under _MAX_BLOCK_BYTES, or the full plane if small."""
    max_rows = max(8, _MAX_BLOCK_BYTES // (channels * _LANES * itemsize))
    if rows <= max_rows:
        return rows                  # full extent: no 8-alignment needed
    return (max_rows // 8) * 8


def _erase_worklist_kernel(work_ref, img_ref, out_ref, *, width):
    """work_ref (SMEM int32[8, G]), one worklist entry per column:
         [img, tile, y0, y1, x0, x1, y_base, x_base]
       img_ref / out_ref: (C, rows, 128) sublane/lane-dense block of one image
       selected by the data-dependent index_map; the output aliases the input."""
    g = pl.program_id(0)
    _, rows, lane_n = img_ref.shape
    tile_elems = rows * lane_n

    y0 = work_ref[2, g]
    y1 = work_ref[3, g]
    x0 = work_ref[4, g]
    x1 = work_ref[5, g]
    y_base = work_ref[6, g]          # exact, host-computed tile origin:
    x_base = work_ref[7, g]          # tile_start_flat = y_base * W + x_base

    # Scalar-gated fast path: if this tile cannot intersect the rectangle it is
    # a plain copy — no iota / decode / compare on the VPU.
    tile_start = y_base * width + x_base
    first_erased = y0 * width + x0
    last_erased = (y1 - 1) * width + x1                  # exclusive
    overlap = ((y1 > y0) & (x1 > x0)
               & (tile_start < last_erased)
               & (tile_start + tile_elems > first_erased))

    @pl.when(jnp.logical_not(overlap))
    def _copy():
        out_ref[...] = img_ref[...]

    @pl.when(overlap)
    def _masked_fill():
        # Tile-local flat offset relative to row y_base; stays tiny
        # (< W + rows*128 << 2^23), so the non-pow-2 decode below is exact.
        r = jax.lax.broadcasted_iota(jnp.int32, (rows, lane_n), 0)
        lane = jax.lax.broadcasted_iota(jnp.int32, (rows, lane_n), 1)
        t = x_base + r * lane_n + lane
        if width & (width - 1) == 0:                     # power of two: shift/mask
            q = t >> (width.bit_length() - 1)
            x = t & (width - 1)
        else:                                            # float recip + exact fix-up
            q = (t.astype(jnp.float32) * (1.0 / width)).astype(jnp.int32)
            rem = t - q * width
            q = q + (rem >= width).astype(jnp.int32) - (rem < 0).astype(jnp.int32)
            x = t - q * width
        y = y_base + q
        # Fused unsigned range checks: (v - lo) u< (hi - lo)  <=>  lo <= v < hi.
        in_y = (y - y0).astype(jnp.uint32) < (y1 - y0).astype(jnp.uint32)
        in_x = (x - x0).astype(jnp.uint32) < (x1 - x0).astype(jnp.uint32)
        inside = (in_y & in_x)[None, :, :]               # mask shared across C
        grey = jnp.asarray(_GREY, dtype=out_ref.dtype)
        out_ref[...] = jnp.where(inside, grey, img_ref[...])


def _erase_tiles_impl(work, imgs, rows_per_tile):
    """imgs (N, C, H, W) + worklist -> imgs with the listed tiles grey-filled.
    Tiles not on the worklist are never DMA'd (output aliases the input)."""
    N, C, H, W = imgs.shape
    HW = H * W
    assert HW % _LANES == 0
    R = HW // _LANES
    itemsize = jnp.dtype(imgs.dtype).itemsize
    G = work.shape[1]
    block_bytes = C * rows_per_tile * _LANES * itemsize

    flat = imgs.reshape(N, C, R, _LANES)   # sublane/lane-dense view (pure bitcast)

    # VMEM: in + out blocks, double-buffered => ~4 x block_bytes (<= ~8 MiB by
    # construction); keep the scoped limit modest so it compiles on every
    # generation (v5e default 16 MiB, v6e/v7x default 32 MiB, v7x physical 64).
    vmem_limit = int(min(max(4 * block_bytes + (2 << 20), 16 << 20), 32 << 20))

    spec = pl.BlockSpec((None, C, rows_per_tile, _LANES),
                        lambda g, w: (w[0, g], 0, w[1, g], 0))
    out = pl.pallas_call(
        functools.partial(_erase_worklist_kernel, width=W),
        out_shape=jax.ShapeDtypeStruct((N, C, R, _LANES), imgs.dtype),
        grid_spec=pltpu.PrefetchScalarGridSpec(
            num_scalar_prefetch=1,        # the (8, G) worklist table in SMEM
            grid=(G,),                    # one step per worklist entry
            in_specs=[spec],
            out_specs=spec,
        ),
        # Input 1 (the image buffer; index counts the scalar-prefetch table at
        # 0) is aliased onto output 0: unvisited tiles stay in place in HBM,
        # visited tiles are updated in place.
        input_output_aliases={1: 0},
        compiler_params=pltpu.CompilerParams(
            dimension_semantics=("parallel",),   # entries are independent ->
                                                 # both v7x TCs can take a share
            vmem_limit_bytes=vmem_limit,
        ),
        cost_estimate=pl.CostEstimate(
            flops=16 * G * C * rows_per_tile * _LANES,   # decode+compare+select
            transcendentals=0,
            bytes_accessed=2 * G * block_bytes + work.size * 4,
        ),
    )(work, flat)
    return out.reshape(N, C, H, W)


@functools.partial(jax.jit, static_argnums=(2,), donate_argnums=(1,))
def _erase_tiles_4d(work, imgs, rows_per_tile):
    return _erase_tiles_impl(work, imgs, rows_per_tile)


@functools.partial(jax.jit, static_argnums=(2,), donate_argnums=(1,))
def _erase_tiles_3d(work, img, rows_per_tile):
    return _erase_tiles_impl(work, img[None], rows_per_tile)[0]


def _build_worklist(rects, H, W, rows_per_tile):
    """rects: (N, 4) [y0, y1, x0, x1] (degenerate rect => image skipped).
    Returns an (8, G) int32 table with G padded to a power of two using copies
    of the last entry (idempotent duplicates), or None if nothing to erase."""
    tile_elems = rows_per_tile * _LANES
    entries = []
    for n, (y0, y1, x0, x1) in enumerate(np.asarray(rects, dtype=np.int64)):
        y0 = max(int(y0), 0); x0 = max(int(x0), 0)
        y1 = min(int(y1), H); x1 = min(int(x1), W)
        if y1 <= y0 or x1 <= x0:
            continue
        first = y0 * W + x0                    # first / last erased flat index
        last = (y1 - 1) * W + x1 - 1
        for j in range(first // tile_elems, last // tile_elems + 1):
            off = j * tile_elems
            entries.append((n, j, y0, y1, x0, x1, off // W, off % W))
    if not entries:
        return None
    padded = 1 << (len(entries) - 1).bit_length()      # bucket grid sizes
    entries.extend([entries[-1]] * (padded - len(entries)))
    return np.asarray(entries, dtype=np.int32).T.copy()   # (8, G): long axis last


def _erase_fallback_jnp(imgs, rects):
    # TODO(synk): no lane-dense Pallas path when H*W is not a multiple of 128;
    # plain-JAX masked fill keeps the semantics for those shapes.
    N, C, H, W = imgs.shape
    yy = jnp.arange(H)[:, None]
    xx = jnp.arange(W)[None, :]
    out = imgs
    for n, (y0, y1, x0, x1) in enumerate(np.asarray(rects, dtype=np.int64)):
        if y1 <= y0 or x1 <= x0:
            continue
        m = (yy >= y0) & (yy < y1) & (xx >= x0) & (xx < x1)
        out = out.at[n].set(jnp.where(m[None], jnp.asarray(_GREY, imgs.dtype), out[n]))
    return out


def random_erase_batch(imgs, rects):
    """Fill rects[i] = [y0, y1, x0, x1] of imgs[i] with 122.  In-place-like: the
    image buffer is donated/aliased (matching the reference's in-place mutation);
    an empty rectangle leaves that image untouched (never DMA'd).
    imgs: (N, C, H, W); rects: (N, 4) ints."""
    N, C, H, W = imgs.shape
    rects = np.asarray(rects)
    assert rects.shape == (N, 4)
    if (H * W) % _LANES != 0:
        return _erase_fallback_jnp(imgs, rects)
    tr = _rows_per_tile(C, (H * W) // _LANES, jnp.dtype(imgs.dtype).itemsize)
    work = _build_worklist(rects, H, W, tr)
    if work is None:                     # nothing intersects: no launch, no copy
        return imgs
    return _erase_tiles_4d(jnp.asarray(work), imgs, tr)


def random_erase_single(img, rect):
    """Single-image variant used by the module: img (C, H, W), rect (y0,y1,x0,x1)."""
    C, H, W = img.shape
    if (H * W) % _LANES != 0:
        return _erase_fallback_jnp(img[None], np.asarray([rect]))[0]
    tr = _rows_per_tile(C, (H * W) // _LANES, jnp.dtype(img.dtype).itemsize)
    work = _build_worklist(np.asarray([rect]), H, W, tr)
    if work is None:
        return img
    return _erase_tiles_3d(jnp.asarray(work), img, tr)


class RandomErase:
    """JAX/Pallas port of the reference nn.Module.  Parameter sampling (host
    RNG, exact call order of the reference) stays in Python; the masked fill
    runs on TPU via `random_erase_single`.  Like the reference (which mutates
    its input), the erased image is updated in place (the input is donated)."""

    def __init__(self, p_erase=0.5, aspect_ratio_range=(0.3, 3.33),
                 area_range=(0.02, 0.4), seed=1):
        self.p = p_erase                        # kept for parity; like the
        self.r1, self.r2 = aspect_ratio_range   # reference, the branch prob is
        self.a1, self.a2 = area_range           # hard-coded to 0.5 in forward
        self._rng = random.Random(seed)         # deterministic host-side RNG
        self._last_rect = None                  # for testing / inspection

    def _sample_rect(self, H, W):
        # Identical math and RNG-call order to the PyTorch reference.
        # NOTE: like the reference, randrange can raise for tiny images with
        # extreme aspect/area draws (empty range); intentionally unchanged.
        S = H * W
        r_e = self._rng.uniform(self.r1, self.r2)
        S_e = S * self._rng.uniform(self.a1, self.a2)
        w_f = math.sqrt(r_e * S_e)
        h_f = w_f / r_e
        w_e, h_e = int(w_f), int(h_f)
        x_e = self._rng.randrange(math.ceil(w_e / 2), math.floor(W - w_e / 2 - 1))
        y_e = self._rng.randrange(math.ceil(h_e / 2), math.floor(H - h_e / 2 - 1))
        x0 = math.floor(x_e - w_e / 2)
        y0 = math.ceil(y_e - h_e / 2)
        return y0, y0 + h_e, x0, x0 + w_e

    def __call__(self, img):
        assert img.ndim == 3
        C, H, W = img.shape
        if self._rng.random() >= 0.5:           # host early-exit: no launch, no copy
            self._last_rect = None
            return img
        rect = self._sample_rect(H, W)
        self._last_rect = rect
        return random_erase_single(img, rect)


if __name__ == "__main__":
    C, H, W = 3, 32, 32   # the reference's grey vector implies 3 channels

    # 1) Module path, erase branch taken (Random(1).random() < 0.5).  The input
    #    is donated (in-place semantics), so snapshot it to host first.
    img1 = jax.random.normal(jax.random.PRNGKey(0), (C, H, W), dtype=jnp.float32)
    ref1 = np.array(img1)
    mod = RandomErase(seed=1)
    out1 = jax.block_until_ready(mod(img1))     # img1 is consumed here
    assert mod._last_rect is not None
    y0, y1, x0, x1 = mod._last_rect
    exp1 = ref1.copy()
    exp1[:, y0:y1, x0:x1] = float(_GREY)
    assert out1.shape == (C, H, W) and out1.dtype == jnp.float32
    np.testing.assert_allclose(np.array(out1), exp1)

    # 2) Module path, no-erase branch (Random(2).random() >= 0.5): host
    #    early-exit returns the input untouched without launching a kernel.
    img2 = jax.random.normal(jax.random.PRNGKey(1), (C, H, W), dtype=jnp.float32)
    mod2 = RandomErase(seed=2)
    assert mod2(img2) is img2

    # 3) Batched path: one worklist entry (image 0's single tile); image 1 has
    #    an empty rectangle, is never visited, and must come back untouched
    #    through the aliased output.
    imgs = jax.random.normal(jax.random.PRNGKey(2), (2, C, H, W), dtype=jnp.float32)
    refb = np.array(imgs)
    rects = np.array([[4, 20, 6, 27], [0, 0, 0, 0]], dtype=np.int32)
    outb = jax.block_until_ready(random_erase_batch(imgs, rects))   # imgs consumed
    expb = refb.copy()
    expb[0, :, 4:20, 6:27] = float(_GREY)
    np.testing.assert_allclose(np.array(outb), expb)

    print("KERNEL_OK")
</pallas_src>

<mosaic_0001>
module attributes {stable_mosaic.version = 11 : i64} {
  func.func @_erase_worklist_kernel(%arg0: i32, %arg1: memref<8x1xi32, #tpu.memory_space<smem>>, %arg2: memref<1x3x8x128xf32, #tpu.memory_space<vmem>>, %arg3: memref<1x3x8x128xf32, #tpu.memory_space<vmem>>) attributes {dimension_semantics = [#tpu.dimension_semantics<parallel>], iteration_bounds = array<i64: 1>, scalar_prefetch = 1 : i64, scratch_operands = 0 : i64, tpu.core_type = #tpu.core_type<tc>, window_params = [{transform_indices = @transform_0, window_bounds = array<i64: 1, 3, 8, 128>}, {transform_indices = @transform_1, window_bounds = array<i64: 1, 3, 8, 128>}]} {
    %c2 = arith.constant 2 : index
    %0 = arith.index_cast %arg0 : i32 to index
    %1 = memref.load %arg1[%c2, %0] : memref<8x1xi32, #tpu.memory_space<smem>>
    %c3 = arith.constant 3 : index
    %2 = arith.index_cast %arg0 : i32 to index
    %3 = memref.load %arg1[%c3, %2] : memref<8x1xi32, #tpu.memory_space<smem>>
    %c4 = arith.constant 4 : index
    %4 = arith.index_cast %arg0 : i32 to index
    %5 = memref.load %arg1[%c4, %4] : memref<8x1xi32, #tpu.memory_space<smem>>
    %c5 = arith.constant 5 : index
    %6 = arith.index_cast %arg0 : i32 to index
    %7 = memref.load %arg1[%c5, %6] : memref<8x1xi32, #tpu.memory_space<smem>>
    %c6 = arith.constant 6 : index
    %8 = arith.index_cast %arg0 : i32 to index
    %9 = memref.load %arg1[%c6, %8] : memref<8x1xi32, #tpu.memory_space<smem>>
    %c7 = arith.constant 7 : index
    %10 = arith.index_cast %arg0 : i32 to index
    %11 = memref.load %arg1[%c7, %10] : memref<8x1xi32, #tpu.memory_space<smem>>
    %c32_i32 = arith.constant 32 : i32
    %12 = arith.muli %9, %c32_i32 : i32
    %13 = arith.addi %12, %11 : i32
    %c32_i32_0 = arith.constant 32 : i32
    %14 = arith.muli %1, %c32_i32_0 : i32
    %15 = arith.addi %14, %5 : i32
    %c1_i32 = arith.constant 1 : i32
    %16 = arith.subi %3, %c1_i32 : i32
    %c32_i32_1 = arith.constant 32 : i32
    %17 = arith.muli %16, %c32_i32_1 : i32
    %18 = arith.addi %17, %7 : i32
    %19 = arith.cmpi sgt, %3, %1 : i32
    %20 = arith.cmpi sgt, %7, %5 : i32
    %21 = arith.andi %19, %20 : i1
    %22 = arith.cmpi slt, %13, %18 : i32
    %23 = arith.andi %21, %22 : i1
    %c1024_i32 = arith.constant 1024 : i32
    %24 = arith.addi %13, %c1024_i32 : i32
    %25 = arith.cmpi sgt, %24, %15 : i32
    %26 = arith.andi %23, %25 : i1
    %true = arith.constant true
    %27 = arith.xori %26, %true : i1
    %28 = arith.extui %27 : i1 to i32
    %c0_i32 = arith.constant 0 : i32
    %29 = arith.cmpi ne, %28, %c0_i32 : i32
    scf.if %29 {
      %c0 = arith.constant 0 : index
      %c0_3 = arith.constant 0 : index
      %c0_4 = arith.constant 0 : index
      %c0_5 = arith.constant 0 : index
      %32 = vector.load %arg2[%c0, %c0_3, %c0_4, %c0_5] : memref<1x3x8x128xf32, #tpu.memory_space<vmem>>, vector<1x3x8x128xf32>
      %33 = vector.shape_cast %32 : vector<1x3x8x128xf32> to vector<3x8x128xf32>
      %c0_6 = arith.constant 0 : index
      %c0_7 = arith.constant 0 : index
      %c0_8 = arith.constant 0 : index
      %c0_9 = arith.constant 0 : index
      %34 = vector.load %arg3[%c0_6, %c0_7, %c0_8, %c0_9] : memref<1x3x8x128xf32, #tpu.memory_space<vmem>>, vector<1x3x8x128xf32>
      %35 = vector.shape_cast %34 : vector<1x3x8x128xf32> to vector<3x8x128xf32>
      %36 = vector.shape_cast %33 : vector<3x8x128xf32> to vector<1x3x8x128xf32>
      tpu.vector_store %arg3[%c0_6, %c0_7, %c0_8, %c0_9], %36 {strides = array<i32>} : memref<1x3x8x128xf32, #tpu.memory_space<vmem>>, vector<1x3x8x128xf32>,
    } else {
    }
    %30 = arith.extui %26 : i1 to i32
    %c0_i32_2 = arith.constant 0 : i32
    %31 = arith.cmpi ne, %30, %c0_i32_2 : i32
    scf.if %31 {
      %32 = tpu.iota {dimensions = array<i32: 0>} : vector<8x128xi32>
      %33 = tpu.iota {dimensions = array<i32: 1>} : vector<8x128xi32>
      %c128_i32 = arith.constant 128 : i32
      %34 = vector.broadcast %c128_i32 : i32 to vector<8x128xi32>
      %35 = arith.muli %32, %34 : vector<8x128xi32>
      %36 = vector.broadcast %11 : i32 to vector<8x128xi32>
      %37 = arith.addi %36, %35 : vector<8x128xi32>
      %38 = arith.addi %37, %33 : vector<8x128xi32>
      %c5_i32 = arith.constant 5 : i32
      %39 = vector.broadcast %c5_i32 : i32 to vector<8x128xi32>
      %40 = arith.shrsi %38, %39 : vector<8x128xi32>
      %c31_i32 = arith.constant 31 : i32
      %41 = vector.broadcast %c31_i32 : i32 to vector<8x128xi32>
      %42 = arith.andi %38, %41 : vector<8x128xi32>
      %43 = vector.broadcast %9 : i32 to vector<8x128xi32>
      %44 = arith.addi %43, %40 : vector<8x128xi32>
      %45 = vector.broadcast %1 : i32 to vector<8x128xi32>
      %46 = arith.subi %44, %45 : vector<8x128xi32>
      %47 = arith.subi %3, %1 : i32
      %48 = vector.broadcast %47 : i32 to vector<8x128xi32>
      %49 = arith.cmpi ult, %46, %48 : vector<8x128xi32>
      %50 = vector.broadcast %5 : i32 to vector<8x128xi32>
      %51 = arith.subi %42, %50 : vector<8x128xi32>
      %52 = arith.subi %7, %5 : i32
      %53 = vector.broadcast %52 : i32 to vector<8x128xi32>
      %54 = arith.cmpi ult, %51, %53 : vector<8x128xi32>
      %55 = arith.andi %49, %54 : vector<8x128xi1>
      %56 = vector.shape_cast %55 : vector<8x128xi1> to vector<1x8x128xi1>
      %c0 = arith.constant 0 : index
      %c0_3 = arith.constant 0 : index
      %c0_4 = arith.constant 0 : index
      %c0_5 = arith.constant 0 : index
      %57 = vector.load %arg2[%c0, %c0_3, %c0_4, %c0_5] : memref<1x3x8x128xf32, #tpu.memory_space<vmem>>, vector<1x3x8x128xf32>
      %58 = vector.shape_cast %57 : vector<1x3x8x128xf32> to vector<3x8x128xf32>
      %cst = arith.constant 1.220000e+02 : f32
      %59 = vector.shape_cast %56 : vector<1x8x128xi1> to vector<1x8x128xi1>
      %60 = vector.broadcast %59 : vector<1x8x128xi1> to vector<3x8x128xi1>
      %61 = vector.broadcast %cst : f32 to vector<3x8x128xf32>
      %62 = arith.select %60, %61, %58 : vector<3x8x128xi1>, vector<3x8x128xf32>
      %c0_6 = arith.constant 0 : index
      %c0_7 = arith.constant 0 : index
      %c0_8 = arith.constant 0 : index
      %c0_9 = arith.constant 0 : index
      %63 = vector.load %arg3[%c0_6, %c0_7, %c0_8, %c0_9] : memref<1x3x8x128xf32, #tpu.memory_space<vmem>>, vector<1x3x8x128xf32>
      %64 = vector.shape_cast %63 : vector<1x3x8x128xf32> to vector<3x8x128xf32>
      %65 = vector.shape_cast %62 : vector<3x8x128xf32> to vector<1x3x8x128xf32>
      tpu.vector_store %arg3[%c0_6, %c0_7, %c0_8, %c0_9], %65 {strides = array<i32>} : memref<1x3x8x128xf32, #tpu.memory_space<vmem>>, vector<1x3x8x128xf32>,
    } else {
    }
    return
  }
  func.func @transform_0(%arg0: i32, %arg1: memref<8x1xi32, #tpu.memory_space<smem>>) -> (i32, i32, i32, i32) {
    %c0 = arith.constant 0 : index
    %0 = arith.index_cast %arg0 : i32 to index
    %1 = memref.load %arg1[%c0, %0] : memref<8x1xi32, #tpu.memory_space<smem>>
    %c1 = arith.constant 1 : index
    %2 = arith.index_cast %arg0 : i32 to index
    %3 = memref.load %arg1[%c1, %2] : memref<8x1xi32, #tpu.memory_space<smem>>
    %c0_i32 = arith.constant 0 : i32
    %c0_i32_0 = arith.constant 0 : i32
    %c0_i32_1 = arith.constant 0 : i32
    return %1, %c0_i32, %3, %c0_i32_0 : i32, i32, i32, i32
  }
  func.func @transform_1(%arg0: i32, %arg1: memref<8x1xi32, #tpu.memory_space<smem>>) -> (i32, i32, i32, i32) {
    %c0 = arith.constant 0 : index
    %0 = arith.index_cast %arg0 : i32 to index
    %1 = memref.load %arg1[%c0, %0] : memref<8x1xi32, #tpu.memory_space<smem>>
    %c1 = arith.constant 1 : index
    %2 = arith.index_cast %arg0 : i32 to index
    %3 = memref.load %arg1[%c1, %2] : memref<8x1xi32, #tpu.memory_space<smem>>
    %c0_i32 = arith.constant 0 : i32
    %c0_i32_0 = arith.constant 0 : i32
    %c0_i32_1 = arith.constant 0 : i32
    return %1, %c0_i32, %3, %c0_i32_0 : i32, i32, i32, i32
  }
}

</mosaic_0001>

<llo_original>
// kernel: _erase_tiles_3d.1
$region0: #{_erase_tiles_3d.1}
  #allocation0 [shape = 'u32[]', space=smem, size = 0x4, offset = 0x4, fixed_abs, tag = 'smem constant byte address 0x4 - core index']
  #allocation1 [shape = 'u32[144,128]{1,0:T(1,128)}', space=vmem, size = 0x12000, scoped, tag = 'internal scratch']
  #allocation2 [shape = 's32[1]{0}', space=sflag, size = 0x4, scoped, tag = 'scoped memory for _erase_tiles_3d.1']
  #allocation3 [shape = 'u8[4096]{0}', space=smem, size = 0x1000, scoped, tag = 'prefetched SMEM operand 0']
  %s0 = inlined_call_operand.vmem [shape: s32[8,1], index: 0, kind: input, shape index: {}]
  %s1 = inlined_call_operand.vmem [shape: f32[1,3,8,128], index: 1, kind: input, shape index: {}, may-alias: {1,2}]
  %s2 = inlined_call_operand.vmem [shape: f32[1,3,8,128], index: 2, kind: output, shape index: {}, may-alias: {1,2}]
  %s3 = sld [smem:[#allocation0]]
  $region22: #{_erase_tiles_3d.1} parent=0
    _
  %s5 = ssub.s32 1, %s3
  %s6 = scalar_select 0, %s5, %s3
  %s7 = sshll.u32 %s0, 4
  %s8 = int_to_ptr.vmem [resolvable:$true] %s7
  %10 = dma.vmem_to_smem %s8, 128, [#allocation3], [#allocation2]
  %11 = dma.done [#allocation2], 128
  %12 = sfence
  // Predicated region
  $region2: #{_erase_tiles_3d.1} parent=0 // pred_check
    _
  $region3: #{_erase_tiles_3d.1} parent=0 // pred_check_branch
    %14 = sbr.rel (0) target = $region5
  $region4: #{_erase_tiles_3d.1} parent=0 // pred_region
    %s15 = sld [smem:[#allocation3]]
    %s16 = sadd.s32 0, 1
    %s17 = smul.u32 %s16, 128
    %s18 = sadd.s32 %s17, 0
    %s19 = sld [smem:[#allocation3 + %s18]]
    %p20 = scmp.lt.s32.totalorder %s15, 0
    %s21 = scalar_select %p20, %s15, 0
    %p22 = scmp.lt.s32.totalorder %s19, 0
    %s23 = scalar_select %p22, %s19, 0
    %s24 = smul.addr %s21, 3
    %s25 = sadd.s32 %s23, %s24
    %s26 = smul.addr %s25, 8
    %s27 = scalar_lea.vmem %s1, %s26
    %s28 = sld [smem:[#allocation3]]
    %s29 = sadd.s32 0, 1
    %s30 = smul.u32 %s29, 128
    %s31 = sadd.s32 %s30, 0
    %s32 = sld [smem:[#allocation3 + %s31]]
  $region5: #{_erase_tiles_3d.1} parent=0 // pred_fallthru
    _
  %s33 = sld [smem:[#allocation3]]
  %s34 = sadd.s32 0, 1
  %s35 = smul.u32 %s34, 128
  %s36 = sadd.s32 %s35, 0
  %s37 = sld [smem:[#allocation3 + %s36]]
  %p38 = scmp.lt.s32.totalorder %s33, 0
  %s39 = scalar_select %p38, %s33, 0
  %p40 = scmp.lt.s32.totalorder %s37, 0
  %s41 = scalar_select %p40, %s37, 0
  %s42 = smul.addr %s39, 3
  %s43 = sadd.s32 %s41, %s42
  %s44 = smul.addr %s43, 8
  %s45 = scalar_lea.vmem %s1, %s44
  %s46 = sld [smem:[#allocation3]]
  %s47 = sadd.s32 0, 1
  %s48 = smul.u32 %s47, 128
  %s49 = sadd.s32 %s48, 0
  %s50 = sld [smem:[#allocation3 + %s49]]
  %p51 = scmp.lt.s32.totalorder %s46, 0
  %s52 = scalar_select %p51, %s46, 0
  %p53 = scmp.lt.s32.totalorder %s50, 0
  %s54 = scalar_select %p53, %s50, 0
  %s55 = smul.addr %s52, 3
  %s56 = sadd.s32 %s54, %s55
  %s57 = smul.addr %s56, 8
  %s58 = scalar_lea.vmem %s2, %s57
  %s59 = sld [smem:[#allocation3]]
  %s60 = sadd.s32 0, 1
  %s61 = smul.u32 %s60, 128
  %s62 = sadd.s32 %s61, 0
  %s63 = sld [smem:[#allocation3 + %s62]]
  %p64 = scmp.lt.s32.totalorder %s59, 0
  %s65 = scalar_select %p64, %s59, 0
  %p66 = scmp.lt.s32.totalorder %s63, 0
  %s67 = scalar_select %p66, %s63, 0
  %s68 = smul.addr %s65, 3
  %s69 = sadd.s32 %s67, %s68
  %s70 = smul.addr %s69, 8
  %s71 = scalar_lea.vmem %s1, %s70
  %s72 = sld [smem:[#allocation3]]
  %s73 = sadd.s32 0, 1
  %s74 = smul.u32 %s73, 128
  %s75 = sadd.s32 %s74, 0
  %s76 = sld [smem:[#allocation3 + %s75]]
  %s77 = sld [smem:[#allocation3]]
  %s78 = sadd.s32 0, 1
  %s79 = smul.u32 %s78, 128
  %s80 = sadd.s32 %s79, 0
  %s81 = sld [smem:[#allocation3 + %s80]]
  %p82 = scmp.lt.s32.totalorder %s77, 0
  %s83 = scalar_select %p82, %s77, 0
  %p84 = scmp.lt.s32.totalorder %s81, 0
  %s85 = scalar_select %p84, %s81, 0
  %s86 = smul.addr %s83, 3
  %s87 = sadd.s32 %s85, %s86
  %s88 = smul.addr %s87, 8
  %s89 = scalar_lea.vmem %s2, %s88
  %s90 = sld [smem:[#allocation3]]
  %s91 = sadd.s32 0, 1
  %s92 = smul.u32 %s91, 128
  %s93 = sadd.s32 %s92, 0
  %s94 = sld [smem:[#allocation3 + %s93]]
  %s95 = sadd.s32 0, 2
  %s96 = smul.u32 %s95, 128
  %s97 = sadd.s32 %s96, 0
  %s98 = sld [smem:[#allocation3 + %s97]]
  %s99 = sadd.s32 0, 3
  %s100 = smul.u32 %s99, 128
  %s101 = sadd.s32 %s100, 0
  %s102 = sld [smem:[#allocation3 + %s101]]
  %s103 = sadd.s32 0, 4
  %s104 = smul.u32 %s103, 128
  %s105 = sadd.s32 %s104, 0
  %s106 = sld [smem:[#allocation3 + %s105]]
  %s107 = sadd.s32 0, 5
  %s108 = smul.u32 %s107, 128
  %s109 = sadd.s32 %s108, 0
  %s110 = sld [smem:[#allocation3 + %s109]]
  %s111 = sadd.s32 0, 6
  %s112 = smul.u32 %s111, 128
  %s113 = sadd.s32 %s112, 0
  %s114 = sld [smem:[#allocation3 + %s113]]
  %s115 = sadd.s32 0, 7
  %s116 = smul.u32 %s115, 128
  %s117 = sadd.s32 %s116, 0
  %s118 = sld [smem:[#allocation3 + %s117]]
  %s119 = smul.u32 %s114, 32
  %s120 = sadd.s32 %s119, %s118
  %s121 = smul.u32 %s98, 32
  %s122 = sadd.s32 %s121, %s106
  %s123 = ssub.s32 %s102, 1
  %s124 = smul.u32 %s123, 32
  %s125 = sadd.s32 %s124, %s110
  %p126 = scmp.gt.s32.totalorder %s102, %s98
  %p127 = scmp.gt.s32.totalorder %s110, %s106
  %p128 = pnand %p126, %p127
  %p129 = pneg %p128
  %p130 = scmp.lt.s32.totalorder %s120, %s125
  %p131 = pnand %p129, %p130
  %p132 = pneg %p131
  %s133 = sadd.s32 %s120, 1024
  %p134 = scmp.gt.s32.totalorder %s133, %s122
  %p135 = pnand %p132, %p134
  %p136 = pneg %p135
  // Predicated region
  $region6: #{_erase_tiles_3d.1} parent=0 // pred_check
    _
  $region7: #{_erase_tiles_3d.1} parent=0 // pred_check_branch
    %138 = sbr.rel (%p135) target = $region9
  $region8: #{_erase_tiles_3d.1} parent=0 // pred_region
    %v139 = vlaneseq
    %v140 = vshrl.u32 %v139, 7
    %v141 = vlaneseq
    %v142 = vand.u32 %v141, 127
    %v143 = vmul.u32 %v140, 128
    %v144 = vstv %s118
    %v145 = vadd.s32 %v144, %v143
    %v146 = vadd.s32 %v145, %v142
    %v147 = vshra.s32 %v146, 5
    %v148 = vand.u32 %v146, 31
    %v149 = vstv %s114
    %v150 = vadd.s32 %v149, %v147
    %v151 = vstv %s98
    %v152 = vsub.s32 %v150, %v151
    %s153 = ssub.s32 %s102, %s98
    %v154 = vstv %s153
    %vm155 = vcmp.lt.u32.totalorder %v152, %v154
    %v156 = vstv %s106
    %v157 = vsub.s32 %v148, %v156
    %s158 = ssub.s32 %s110, %s106
    %v159 = vstv %s158
    %vm160 = vcmp.lt.u32.totalorder %v157, %v159
    %vm161 = vmand %vm155, %vm160
    %v162 = vld [vmem:[%s71] sm:$0xff]
    %v163 = vld [vmem:[%s71 + $0x8] sm:$0xff]
    %v164 = vld [vmem:[%s71 + $0x10] sm:$0xff]
    %v165 = vsel %vm161, 1, 0
    %vm166 = vcmp.eq.s32.totalorder %v165, 1
    %v167 = vsel %vm166, 122.0, %v162
    %v168 = vsel %vm166, 122.0, %v163
    %v169 = vsel %vm166, 122.0, %v164
    %170 = vst [vmem:[%s89] sm:$0xff] %v167
    %171 = vst [vmem:[%s89 + $0x8] sm:$0xff] %v168
    %172 = vst [vmem:[%s89 + $0x10] sm:$0xff] %v169
  $region9: #{_erase_tiles_3d.1} parent=0 // pred_fallthru
    _
  // Predicated region
  $region10: #{_erase_tiles_3d.1} parent=0 // pred_check
    %p173 = pneg %p135
  $region11: #{_erase_tiles_3d.1} parent=0 // pred_check_branch
    %175 = sbr.rel (%p173) target = $region13
  $region12: #{_erase_tiles_3d.1} parent=0 // pred_region
    %v176 = vld [vmem:[%s71] sm:$0xff]
    %v177 = vld [vmem:[%s71 + $0x8] sm:$0xff]
    %v178 = vld [vmem:[%s71 + $0x10] sm:$0xff]
    %179 = vst [vmem:[%s89] sm:$0xff] %v176
    %180 = vst [vmem:[%s89 + $0x8] sm:$0xff] %v177
    %181 = vst [vmem:[%s89 + $0x10] sm:$0xff] %v178
  $region13: #{_erase_tiles_3d.1} parent=0 // pred_fallthru
    _
  %s182 = sld [smem:[#allocation3]]
  %s183 = sadd.s32 0, 1
  %s184 = smul.u32 %s183, 128
  %s185 = sadd.s32 %s184, 0
  %s186 = sld [smem:[#allocation3 + %s185]]
  %p187 = scmp.lt.s32.totalorder %s182, 0
  %s188 = scalar_select %p187, %s182, 0
  %p189 = scmp.lt.s32.totalorder %s186, 0
  %s190 = scalar_select %p189, %s186, 0
  %s191 = smul.addr %s188, 3
  %s192 = sadd.s32 %s190, %s191
  %s193 = smul.addr %s192, 8
  %s194 = scalar_lea.vmem %s2, %s193
  // Predicated region
  $region14: #{_erase_tiles_3d.1} parent=0 // pred_check
    _
  $region15: #{_erase_tiles_3d.1} parent=0 // pred_check_branch
    %196 = sbr.rel (0) target = $region17
  $region16: #{_erase_tiles_3d.1} parent=0 // pred_region
    %s197 = sld [smem:[#allocation3]]
    %s198 = sadd.s32 0, 1
    %s199 = smul.u32 %s198, 128
    %s200 = sadd.s32 %s199, 0
    %s201 = sld [smem:[#allocation3 + %s200]]
  $region17: #{_erase_tiles_3d.1} parent=0 // pred_fallthru
    _
  // Predicated region
  $region18: #{_erase_tiles_3d.1} parent=0 // pred_check
    _
  $region19: #{_erase_tiles_3d.1} parent=0 // pred_check_branch
    %203 = sbr.rel (0) target = $region21
  $region20: #{_erase_tiles_3d.1} parent=0 // pred_region
    %s204 = sld [smem:[#allocation3]]
    %s205 = sadd.s32 0, 1
    %s206 = smul.u32 %s205, 128
    %s207 = sadd.s32 %s206, 0
    %s208 = sld [smem:[#allocation3 + %s207]]
    %p209 = scmp.lt.s32.totalorder %s204, 0
    %s210 = scalar_select %p209, %s204, 0
    %p211 = scmp.lt.s32.totalorder %s208, 0
    %s212 = scalar_select %p211, %s208, 0
    %s213 = smul.addr %s210, 3
    %s214 = sadd.s32 %s212, %s213
    %s215 = smul.addr %s214, 8
    %s216 = scalar_lea.vmem %s2, %s215
  $region21: #{_erase_tiles_3d.1} parent=0 // pred_fallthru
    _

</llo_original>
